<compile_context>
chip_gen: v7x
topology: tpu7x:2x2x1
jax: 0.10.0
libtpu: 0.0.40
codegen_flags: <defaults>
</compile_context>

<pallas_src>
import jax
import jax.numpy as jnp
import numpy as np
from jax.experimental import pallas as pl
from jax.experimental.pallas import tpu as pltpu


def resnet_block_kernel(a_ref, b_ref, x_ref, o_ref):
    """a_ref: SMEM (C, C) = (I + W_eff)^T; b_ref: SMEM (C,); x/o: (1, C, St, 128)."""
    C = x_ref.shape[1]
    # Load each input channel's full-vreg spatial slab once (f32 accumulation).
    x = [x_ref[0, j].astype(jnp.float32) for j in range(C)]            # (St, 128) each
    # out[i] = b[i] + sum_j a[i, j] * x[j]  -- scalar coefficients splat into
    # VPU FMAs for free; skip connection is folded into `a` via the +I term.
    for i in range(C):                                                  # static unroll (C small)
        acc = x[0] * a_ref[i, 0] + b_ref[i]
        for j in range(1, C):
            acc = acc + x[j] * a_ref[i, j]
        o_ref[0, i] = acc.astype(o_ref.dtype)
    # TODO(synk): for wide-channel configs (C >> 8) switch the contraction to an
    # MXU matmul with channels on lanes; the scalar-FMA form targets small C.


def resnet_block(x_nchw, folded):
    """x_nchw: (N, C, H, W).  folded: dict with 'a' (C, C) and 'b' (C,)."""
    N, C, H, W = x_nchw.shape
    L = H * W
    dtype = x_nchw.dtype
    itemsize = np.dtype(dtype).itemsize

    # Free reshape only (contiguous NCHW); no HBM-round-trip transposes.
    x3d = x_nchw.reshape(N, C, L)

    # Lane-dense layout: spatial axis split into rows of 128 lanes.
    S = (L + 127) // 128                       # sublane rows needed (pre-padding)

    # Tile sizing from an explicit VMEM budget.  One x tile buffer is capped at
    # ~6 MiB; with double-buffered in+out the footprint is ~4x that (~24 MiB),
    # which fits v7x's 64 MiB physical / 32 MiB scoped VMEM with headroom and is
    # trivially fine on v5e/v6e (128 MiB).
    tile_budget_bytes = 6 * 1024 * 1024
    max_rows = max(1, tile_budget_bytes // (C * 128 * itemsize))
    if S <= max_rows:
        s_tile = S                             # single spatial tile (block == full dim)
    else:
        s_tile = max(8, (max_rows // 8) * 8)   # (8,128)-aligned tile rows

    # Pad spatial so S is a multiple of s_tile (and L a multiple of 128).
    s_pad = ((S + s_tile - 1) // s_tile) * s_tile
    l_pad = s_pad * 128
    if l_pad != L:
        x3d = jnp.pad(x3d, ((0, 0), (0, 0), (0, l_pad - L)))
    x4d = x3d.reshape(N, C, s_pad, 128)
    n_tiles = s_pad // s_tile

    a = folded["a"].astype(jnp.float32)        # (C, C)
    b = folded["b"].astype(jnp.float32).reshape(C)

    smem_spec = pl.BlockSpec(memory_space=pltpu.MemorySpace.SMEM)

    if n_tiles == 1:
        # Collapse the degenerate spatial grid axis: one grid step per batch row.
        grid = (N,)
        xo_map = lambda n: (n, 0, 0, 0)
        dims = ("parallel",)
    else:
        grid = (N, n_tiles)
        xo_map = lambda n, t: (n, 0, t, 0)
        dims = ("parallel", "parallel")        # both axes independent -> megacore-friendly

    out4d = pl.pallas_call(
        resnet_block_kernel,
        out_shape=jax.ShapeDtypeStruct((N, C, s_pad, 128), dtype),
        grid=grid,
        in_specs=[
            smem_spec,                                         # folded weight (SMEM scalars)
            smem_spec,                                         # folded bias   (SMEM scalars)
            pl.BlockSpec((1, C, s_tile, 128), xo_map),         # x tile (full-vreg slabs)
        ],
        out_specs=pl.BlockSpec((1, C, s_tile, 128), xo_map),
        compiler_params=pltpu.CompilerParams(
            dimension_semantics=dims,
            vmem_limit_bytes=32 * 1024 * 1024),
    )(a, b, x4d)

    out3d = out4d.reshape(N, C, l_pad)
    if l_pad != L:
        out3d = out3d[:, :, :L]
    return out3d.reshape(N, C, H, W)
    # Note: bf16 activations are supported unchanged (accumulation stays f32 in
    # kernel); the op is HBM-bound so bf16 I/O roughly halves wall-clock.


def make_raw_params(key, dim, cfg):
    """Deterministic synthetic parameters matching the PyTorch module shapes."""
    ks = jax.random.split(key, 10)
    return dict(
        # BatchNorm2d(dim): gamma, beta, running_mean, running_var
        g1=jax.random.normal(ks[0], (dim,), jnp.float32) * 0.1 + 1.0,
        be1=jax.random.normal(ks[1], (dim,), jnp.float32) * 0.1,
        rm1=jax.random.normal(ks[2], (dim,), jnp.float32) * 0.1,
        rv1=jax.random.uniform(ks[3], (dim,), jnp.float32, 0.5, 1.5),
        # channel_selection(dim).indexes initialized to ones (identity)
        sel=jnp.ones((dim,), jnp.float32),
        # Conv2d(cfg[0], cfg[1], 1, bias=False): weight (out, in) (1x1 squeezed)
        w1_oihw=jax.random.normal(ks[4], (cfg[1], cfg[0]), jnp.float32) * 0.2,
        # BatchNorm2d(cfg[1])
        g2=jax.random.normal(ks[5], (cfg[1],), jnp.float32) * 0.1 + 1.0,
        be2=jax.random.normal(ks[6], (cfg[1],), jnp.float32) * 0.1,
        rm2=jax.random.normal(ks[7], (cfg[1],), jnp.float32) * 0.1,
        rv2=jax.random.uniform(ks[8], (cfg[1],), jnp.float32, 0.5, 1.5),
        # Conv2d(cfg[1], dim, 1, bias=False): weight (out, in)
        w2_oihw=jax.random.normal(ks[9], (dim, cfg[1]), jnp.float32) * 0.2,
    )


def fold_params(raw, eps=1e-5):
    """Fold BN1 -> channel_selection -> conv1 -> BN2 -> conv2 (+ skip) into A, b."""
    s1 = raw["g1"] / jnp.sqrt(raw["rv1"] + eps)
    b1 = raw["be1"] - raw["rm1"] * s1
    s2 = raw["g2"] / jnp.sqrt(raw["rv2"] + eps)
    b2 = raw["be2"] - raw["rm2"] * s2
    w1 = raw["w1_oihw"].T                                   # (C, C1): row-vec h @ w1
    w2 = raw["w2_oihw"].T                                   # (C1, C)
    w_eff = ((s1 * raw["sel"])[:, None] * w1) @ (s2[:, None] * w2)   # (C, C)
    b_eff = (((b1 * raw["sel"]) @ w1) * s2 + b2) @ w2                # (C,)
    C = w_eff.shape[0]
    # Channels-first (row) form used by the kernel: out[i] = sum_j a[i,j]*x[j] + b[i].
    a = (jnp.eye(C, dtype=jnp.float32) + w_eff).T
    return {"a": a, "b": b_eff}
    # TODO(synk): if channel_selection.indexes were pruned (zeros), the PyTorch
    # module *drops* channels (gather) and conv1's input width changes; with the
    # all-ones initialization modeled here the multiply-fold is exact.


def reference(x, raw, eps=1e-5):
    """Unfolded pure-JAX reference in the original PyTorch op order (NCHW)."""
    s1 = raw["g1"] / jnp.sqrt(raw["rv1"] + eps)
    b1 = raw["be1"] - raw["rm1"] * s1
    s2 = raw["g2"] / jnp.sqrt(raw["rv2"] + eps)
    b2 = raw["be2"] - raw["rm2"] * s2
    h = x * s1[None, :, None, None] + b1[None, :, None, None]
    h = h * raw["sel"][None, :, None, None]
    h = jnp.einsum("nchw,oc->nohw", h, raw["w1_oihw"])
    h = h * s2[None, :, None, None] + b2[None, :, None, None]
    h = jnp.einsum("nchw,oc->nohw", h, raw["w2_oihw"])
    return x + h


if __name__ == "__main__":
    key = jax.random.PRNGKey(0)
    kx, kp = jax.random.split(key)

    N, dim, H, W = 2, 4, 16, 16        # x: (2, 4, 16, 16) NCHW
    cfg = [4, 8]                       # cfg[0] == dim (identity channel selection)

    x = jax.random.normal(kx, (N, dim, H, W), jnp.float32)
    raw = make_raw_params(kp, dim, cfg)
    folded = fold_params(raw)

    out = resnet_block(x, folded)
    out = jax.block_until_ready(out)

    ref = jax.block_until_ready(reference(x, raw))
    np.testing.assert_allclose(np.asarray(out), np.asarray(ref),
                               rtol=1e-5, atol=1e-5)
    print("KERNEL_OK")
</pallas_src>

<mosaic_0001>
module attributes {stable_mosaic.version = 11 : i64} {
  func.func @resnet_block_kernel(%arg0: i32, %arg1: memref<4x4xf32, #tpu.memory_space<smem>>, %arg2: memref<4xf32, #tpu.memory_space<smem>>, %arg3: memref<1x4x2x128xf32, #tpu.memory_space<vmem>>, %arg4: memref<1x4x2x128xf32, #tpu.memory_space<vmem>>) attributes {dimension_semantics = [#tpu.dimension_semantics<parallel>], iteration_bounds = array<i64: 2>, scalar_prefetch = 0 : i64, scratch_operands = 0 : i64, tpu.core_type = #tpu.core_type<tc>, window_params = [{transform_indices = @transform_0, window_bounds = array<i64: 4, 4>}, {transform_indices = @transform_1, window_bounds = array<i64: 4>}, {transform_indices = @transform_2, window_bounds = array<i64: 1, 4, 2, 128>}, {transform_indices = @transform_3, window_bounds = array<i64: 1, 4, 2, 128>}]} {
    %c0 = arith.constant 0 : index
    %c0_0 = arith.constant 0 : index
    %c0_1 = arith.constant 0 : index
    %c0_2 = arith.constant 0 : index
    %0 = vector.load %arg3[%c0, %c0_0, %c0_1, %c0_2] : memref<1x4x2x128xf32, #tpu.memory_space<vmem>>, vector<1x1x2x128xf32>
    %1 = vector.shape_cast %0 : vector<1x1x2x128xf32> to vector<2x128xf32>
    %c0_3 = arith.constant 0 : index
    %c1 = arith.constant 1 : index
    %c0_4 = arith.constant 0 : index
    %c0_5 = arith.constant 0 : index
    %2 = vector.load %arg3[%c0_3, %c1, %c0_4, %c0_5] : memref<1x4x2x128xf32, #tpu.memory_space<vmem>>, vector<1x1x2x128xf32>
    %3 = vector.shape_cast %2 : vector<1x1x2x128xf32> to vector<2x128xf32>
    %c0_6 = arith.constant 0 : index
    %c2 = arith.constant 2 : index
    %c0_7 = arith.constant 0 : index
    %c0_8 = arith.constant 0 : index
    %4 = vector.load %arg3[%c0_6, %c2, %c0_7, %c0_8] : memref<1x4x2x128xf32, #tpu.memory_space<vmem>>, vector<1x1x2x128xf32>
    %5 = vector.shape_cast %4 : vector<1x1x2x128xf32> to vector<2x128xf32>
    %c0_9 = arith.constant 0 : index
    %c3 = arith.constant 3 : index
    %c0_10 = arith.constant 0 : index
    %c0_11 = arith.constant 0 : index
    %6 = vector.load %arg3[%c0_9, %c3, %c0_10, %c0_11] : memref<1x4x2x128xf32, #tpu.memory_space<vmem>>, vector<1x1x2x128xf32>
    %7 = vector.shape_cast %6 : vector<1x1x2x128xf32> to vector<2x128xf32>
    %c0_12 = arith.constant 0 : index
    %c0_13 = arith.constant 0 : index
    %8 = memref.load %arg1[%c0_12, %c0_13] : memref<4x4xf32, #tpu.memory_space<smem>>
    %9 = vector.broadcast %8 : f32 to vector<2x128xf32>
    %10 = arith.mulf %1, %9 : vector<2x128xf32>
    %c0_14 = arith.constant 0 : index
    %11 = memref.load %arg2[%c0_14] : memref<4xf32, #tpu.memory_space<smem>>
    %12 = vector.broadcast %11 : f32 to vector<2x128xf32>
    %13 = arith.addf %10, %12 : vector<2x128xf32>
    %c0_15 = arith.constant 0 : index
    %c1_16 = arith.constant 1 : index
    %14 = memref.load %arg1[%c0_15, %c1_16] : memref<4x4xf32, #tpu.memory_space<smem>>
    %15 = vector.broadcast %14 : f32 to vector<2x128xf32>
    %16 = arith.mulf %3, %15 : vector<2x128xf32>
    %17 = arith.addf %13, %16 : vector<2x128xf32>
    %c0_17 = arith.constant 0 : index
    %c2_18 = arith.constant 2 : index
    %18 = memref.load %arg1[%c0_17, %c2_18] : memref<4x4xf32, #tpu.memory_space<smem>>
    %19 = vector.broadcast %18 : f32 to vector<2x128xf32>
    %20 = arith.mulf %5, %19 : vector<2x128xf32>
    %21 = arith.addf %17, %20 : vector<2x128xf32>
    %c0_19 = arith.constant 0 : index
    %c3_20 = arith.constant 3 : index
    %22 = memref.load %arg1[%c0_19, %c3_20] : memref<4x4xf32, #tpu.memory_space<smem>>
    %23 = vector.broadcast %22 : f32 to vector<2x128xf32>
    %24 = arith.mulf %7, %23 : vector<2x128xf32>
    %25 = arith.addf %21, %24 : vector<2x128xf32>
    %c0_21 = arith.constant 0 : index
    %c0_22 = arith.constant 0 : index
    %c0_23 = arith.constant 0 : index
    %c0_24 = arith.constant 0 : index
    %26 = vector.load %arg4[%c0_21, %c0_22, %c0_23, %c0_24] : memref<1x4x2x128xf32, #tpu.memory_space<vmem>>, vector<1x1x2x128xf32>
    %27 = vector.shape_cast %26 : vector<1x1x2x128xf32> to vector<2x128xf32>
    %28 = vector.shape_cast %25 : vector<2x128xf32> to vector<1x1x2x128xf32>
    tpu.vector_store %arg4[%c0_21, %c0_22, %c0_23, %c0_24], %28 {strides = array<i32>} : memref<1x4x2x128xf32, #tpu.memory_space<vmem>>, vector<1x1x2x128xf32>,
    %c1_25 = arith.constant 1 : index
    %c0_26 = arith.constant 0 : index
    %29 = memref.load %arg1[%c1_25, %c0_26] : memref<4x4xf32, #tpu.memory_space<smem>>
    %30 = vector.broadcast %29 : f32 to vector<2x128xf32>
    %31 = arith.mulf %1, %30 : vector<2x128xf32>
    %c1_27 = arith.constant 1 : index
    %32 = memref.load %arg2[%c1_27] : memref<4xf32, #tpu.memory_space<smem>>
    %33 = vector.broadcast %32 : f32 to vector<2x128xf32>
    %34 = arith.addf %31, %33 : vector<2x128xf32>
    %c1_28 = arith.constant 1 : index
    %c1_29 = arith.constant 1 : index
    %35 = memref.load %arg1[%c1_28, %c1_29] : memref<4x4xf32, #tpu.memory_space<smem>>
    %36 = vector.broadcast %35 : f32 to vector<2x128xf32>
    %37 = arith.mulf %3, %36 : vector<2x128xf32>
    %38 = arith.addf %34, %37 : vector<2x128xf32>
    %c1_30 = arith.constant 1 : index
    %c2_31 = arith.constant 2 : index
    %39 = memref.load %arg1[%c1_30, %c2_31] : memref<4x4xf32, #tpu.memory_space<smem>>
    %40 = vector.broadcast %39 : f32 to vector<2x128xf32>
    %41 = arith.mulf %5, %40 : vector<2x128xf32>
    %42 = arith.addf %38, %41 : vector<2x128xf32>
    %c1_32 = arith.constant 1 : index
    %c3_33 = arith.constant 3 : index
    %43 = memref.load %arg1[%c1_32, %c3_33] : memref<4x4xf32, #tpu.memory_space<smem>>
    %44 = vector.broadcast %43 : f32 to vector<2x128xf32>
    %45 = arith.mulf %7, %44 : vector<2x128xf32>
    %46 = arith.addf %42, %45 : vector<2x128xf32>
    %c0_34 = arith.constant 0 : index
    %c1_35 = arith.constant 1 : index
    %c0_36 = arith.constant 0 : index
    %c0_37 = arith.constant 0 : index
    %47 = vector.load %arg4[%c0_34, %c1_35, %c0_36, %c0_37] : memref<1x4x2x128xf32, #tpu.memory_space<vmem>>, vector<1x1x2x128xf32>
    %48 = vector.shape_cast %47 : vector<1x1x2x128xf32> to vector<2x128xf32>
    %49 = vector.shape_cast %46 : vector<2x128xf32> to vector<1x1x2x128xf32>
    tpu.vector_store %arg4[%c0_34, %c1_35, %c0_36, %c0_37], %49 {strides = array<i32>} : memref<1x4x2x128xf32, #tpu.memory_space<vmem>>, vector<1x1x2x128xf32>,
    %c2_38 = arith.constant 2 : index
    %c0_39 = arith.constant 0 : index
    %50 = memref.load %arg1[%c2_38, %c0_39] : memref<4x4xf32, #tpu.memory_space<smem>>
    %51 = vector.broadcast %50 : f32 to vector<2x128xf32>
    %52 = arith.mulf %1, %51 : vector<2x128xf32>
    %c2_40 = arith.constant 2 : index
    %53 = memref.load %arg2[%c2_40] : memref<4xf32, #tpu.memory_space<smem>>
    %54 = vector.broadcast %53 : f32 to vector<2x128xf32>
    %55 = arith.addf %52, %54 : vector<2x128xf32>
    %c2_41 = arith.constant 2 : index
    %c1_42 = arith.constant 1 : index
    %56 = memref.load %arg1[%c2_41, %c1_42] : memref<4x4xf32, #tpu.memory_space<smem>>
    %57 = vector.broadcast %56 : f32 to vector<2x128xf32>
    %58 = arith.mulf %3, %57 : vector<2x128xf32>
    %59 = arith.addf %55, %58 : vector<2x128xf32>
    %c2_43 = arith.constant 2 : index
    %c2_44 = arith.constant 2 : index
    %60 = memref.load %arg1[%c2_43, %c2_44] : memref<4x4xf32, #tpu.memory_space<smem>>
    %61 = vector.broadcast %60 : f32 to vector<2x128xf32>
    %62 = arith.mulf %5, %61 : vector<2x128xf32>
    %63 = arith.addf %59, %62 : vector<2x128xf32>
    %c2_45 = arith.constant 2 : index
    %c3_46 = arith.constant 3 : index
    %64 = memref.load %arg1[%c2_45, %c3_46] : memref<4x4xf32, #tpu.memory_space<smem>>
    %65 = vector.broadcast %64 : f32 to vector<2x128xf32>
    %66 = arith.mulf %7, %65 : vector<2x128xf32>
    %67 = arith.addf %63, %66 : vector<2x128xf32>
    %c0_47 = arith.constant 0 : index
    %c2_48 = arith.constant 2 : index
    %c0_49 = arith.constant 0 : index
    %c0_50 = arith.constant 0 : index
    %68 = vector.load %arg4[%c0_47, %c2_48, %c0_49, %c0_50] : memref<1x4x2x128xf32, #tpu.memory_space<vmem>>, vector<1x1x2x128xf32>
    %69 = vector.shape_cast %68 : vector<1x1x2x128xf32> to vector<2x128xf32>
    %70 = vector.shape_cast %67 : vector<2x128xf32> to vector<1x1x2x128xf32>
    tpu.vector_store %arg4[%c0_47, %c2_48, %c0_49, %c0_50], %70 {strides = array<i32>} : memref<1x4x2x128xf32, #tpu.memory_space<vmem>>, vector<1x1x2x128xf32>,
    %c3_51 = arith.constant 3 : index
    %c0_52 = arith.constant 0 : index
    %71 = memref.load %arg1[%c3_51, %c0_52] : memref<4x4xf32, #tpu.memory_space<smem>>
    %72 = vector.broadcast %71 : f32 to vector<2x128xf32>
    %73 = arith.mulf %1, %72 : vector<2x128xf32>
    %c3_53 = arith.constant 3 : index
    %74 = memref.load %arg2[%c3_53] : memref<4xf32, #tpu.memory_space<smem>>
    %75 = vector.broadcast %74 : f32 to vector<2x128xf32>
    %76 = arith.addf %73, %75 : vector<2x128xf32>
    %c3_54 = arith.constant 3 : index
    %c1_55 = arith.constant 1 : index
    %77 = memref.load %arg1[%c3_54, %c1_55] : memref<4x4xf32, #tpu.memory_space<smem>>
    %78 = vector.broadcast %77 : f32 to vector<2x128xf32>
    %79 = arith.mulf %3, %78 : vector<2x128xf32>
    %80 = arith.addf %76, %79 : vector<2x128xf32>
    %c3_56 = arith.constant 3 : index
    %c2_57 = arith.constant 2 : index
    %81 = memref.load %arg1[%c3_56, %c2_57] : memref<4x4xf32, #tpu.memory_space<smem>>
    %82 = vector.broadcast %81 : f32 to vector<2x128xf32>
    %83 = arith.mulf %5, %82 : vector<2x128xf32>
    %84 = arith.addf %80, %83 : vector<2x128xf32>
    %c3_58 = arith.constant 3 : index
    %c3_59 = arith.constant 3 : index
    %85 = memref.load %arg1[%c3_58, %c3_59] : memref<4x4xf32, #tpu.memory_space<smem>>
    %86 = vector.broadcast %85 : f32 to vector<2x128xf32>
    %87 = arith.mulf %7, %86 : vector<2x128xf32>
    %88 = arith.addf %84, %87 : vector<2x128xf32>
    %c0_60 = arith.constant 0 : index
    %c3_61 = arith.constant 3 : index
    %c0_62 = arith.constant 0 : index
    %c0_63 = arith.constant 0 : index
    %89 = vector.load %arg4[%c0_60, %c3_61, %c0_62, %c0_63] : memref<1x4x2x128xf32, #tpu.memory_space<vmem>>, vector<1x1x2x128xf32>
    %90 = vector.shape_cast %89 : vector<1x1x2x128xf32> to vector<2x128xf32>
    %91 = vector.shape_cast %88 : vector<2x128xf32> to vector<1x1x2x128xf32>
    tpu.vector_store %arg4[%c0_60, %c3_61, %c0_62, %c0_63], %91 {strides = array<i32>} : memref<1x4x2x128xf32, #tpu.memory_space<vmem>>, vector<1x1x2x128xf32>,
    return
  }
  func.func @transform_0(%arg0: i32) -> (i32, i32) {
    %c0_i32 = arith.constant 0 : i32
    %c0_i32_0 = arith.constant 0 : i32
    %c0_i32_1 = arith.constant 0 : i32
    return %c0_i32, %c0_i32_0 : i32, i32
  }
  func.func @transform_1(%arg0: i32) -> i32 {
    %c0_i32 = arith.constant 0 : i32
    %c0_i32_0 = arith.constant 0 : i32
    return %c0_i32 : i32
  }
  func.func @transform_2(%arg0: i32) -> (i32, i32, i32, i32) {
    %c0_i32 = arith.constant 0 : i32
    %c0_i32_0 = arith.constant 0 : i32
    %c0_i32_1 = arith.constant 0 : i32
    %c0_i32_2 = arith.constant 0 : i32
    return %arg0, %c0_i32, %c0_i32_0, %c0_i32_1 : i32, i32, i32, i32
  }
  func.func @transform_3(%arg0: i32) -> (i32, i32, i32, i32) {
    %c0_i32 = arith.constant 0 : i32
    %c0_i32_0 = arith.constant 0 : i32
    %c0_i32_1 = arith.constant 0 : i32
    %c0_i32_2 = arith.constant 0 : i32
    return %arg0, %c0_i32, %c0_i32_0, %c0_i32_1 : i32, i32, i32, i32
  }
}

</mosaic_0001>

<llo_original>
// kernel: tpu_custom_call.1
$region0: #{tpu_custom_call.1}
  #allocation0 [shape = 'u32[]', space=smem, size = 0x4, offset = 0x4, fixed_abs, tag = 'smem constant byte address 0x4 - core index']
  #allocation1 [shape = 'u32[144,128]{1,0:T(1,128)}', space=vmem, size = 0x12000, scoped, tag = 'internal scratch']
  %s0 = inlined_call_operand.hbm [shape: f32[4,4], index: 0, kind: input, shape index: {}]
  %s1 = inlined_call_operand.vmem [shape: f32[4], index: 1, kind: input, shape index: {}]
  %s2 = inlined_call_operand.hbm [shape: f32[2,4,2,128], index: 2, kind: input, shape index: {}]
  %s3 = inlined_call_operand.hbm [shape: f32[2,4,2,128], index: 3, kind: output, shape index: {}]
  %s4 = sld [smem:[#allocation0]]
  $region57: #{tpu_custom_call.1} parent=0
    _
  %s6 = ssub.s32 1, %s4
  %s7 = scalar_select 0, %s6, %s4
  $region1: #{tpu_custom_call.1} parent=0
    #allocation2 [shape = 'u8[2048]{0}', space=smem, size = 0x800, scoped, tag = 'input window, operand 0, single buffered']
    #allocation3 [shape = 's32[2]{0}', space=sflag, size = 0x8, scoped, tag = 'scoped memory for tpu_custom_call.1']
    #allocation4 [shape = 's32[2]{0}', space=sflag, size = 0x8, scoped, tag = 'scoped memory for tpu_custom_call.1']
    #allocation5 [shape = 's32[2]{0}', space=sflag, size = 0x8, scoped, tag = 'scoped memory for tpu_custom_call.1']
    #allocation6 [shape = 's32[2]{0}', space=sflag, size = 0x8, scoped, tag = 'scoped memory for tpu_custom_call.1']
    #allocation7 [shape = 'u8[512]{0}', space=smem, size = 0x200, scoped, tag = 'input window, operand 1, single buffered']
    #allocation8 [shape = 'u8[8192]{0}', space=vmem, size = 0x2000, scoped, tag = 'input window, operand 2']
    #allocation9 [shape = 'u8[8192]{0}', space=vmem, size = 0x2000, scoped, tag = 'output window, operand 0']
    %8 = vsyncpa [#allocation5], 0
    %9 = vsyncpa [#allocation6], 0
    %10 = vsyncpa [#allocation3], 0
    %s11 = scalar_lea.sflag [#allocation3], 1
    %12 = vsyncpa %s11, 0
    %13 = vsyncpa [#allocation4], 0
    %s14 = scalar_lea.sflag [#allocation4], 1
    %15 = vsyncpa %s14, 0
    loop: start=0, step=1, limit=4
    $region2: #{tpu_custom_call.1} parent=1 // loop_pre_header
      _
    $region3: #{tpu_custom_call.1} parent=1 // loop_header
      %s17 = sphi 0, %s21
      %p18 = scmp.ge.s32.totalorder %s17, 4
      %s25 = sphi 0, %s25
      %s27 = sphi 0, %s25
      %s28 = sphi 0, %s27
      %s42 = sphi 0, %s28
      %s46 = sphi 0, %s46
      %s48 = sphi 0, %s46
      %s49 = sphi 0, %s48
      %s63 = sphi 0, %s49
      %s69 = sphi 0, %s71
      %s72 = sphi 0, %s69
      %s73 = sphi 0, %s72
      %s89 = sphi 0, %s73
      %s95 = sphi 0, %s97
      %s98 = sphi 0, %s95
      %s99 = sphi 0, %s98
      %s115 = sphi 0, %s99
    $region4: #{tpu_custom_call.1} parent=1 // loop_header_branch
      %20 = sbr.rel (%p18) target = $region8
    $region5: #{tpu_custom_call.1} parent=1 // loop_body
      %s22 = ssub.s32 %s17, 1
      %s23 = ssub.s32 %s17, 2
      %s24 = sadd.s32 %s17, 1
      %s26 = sadd.s32 %s25, 1
      %p29 = scmp.eq.s32.totalorder %s17, 1
      %p30 = scmp.ne.s32.totalorder %s25, %s27
      %p31 = scmp.eq.s32.totalorder %s17, 0
      %p32 = por %p30, %p31
      %p33 = scmp.ne.s32.totalorder %s25, %s27
      %p34 = scmp.eq.s32.totalorder %s22, 1
      %p35 = por %p33, %p34
      %p36 = scmp.ne.s32.totalorder %s27, %s28
      %p37 = scmp.eq.s32.totalorder %s22, 0
      %p38 = por %p36, %p37
      %p39 = scmp.ne.s32.totalorder %s27, %s28
      %p40 = scmp.eq.s32.totalorder %s23, 1
      %p41 = por %p39, %p40
      %p43 = scmp.ne.s32.totalorder %s28, %s42
      %p44 = scmp.eq.s32.totalorder %s23, 0
      %p45 = por %p43, %p44
      %s47 = sadd.s32 %s46, 1
      %p50 = scmp.eq.s32.totalorder %s17, 1
      %p51 = scmp.ne.s32.totalorder %s46, %s48
      %p52 = scmp.eq.s32.totalorder %s17, 0
      %p53 = por %p51, %p52
      %p54 = scmp.ne.s32.totalorder %s46, %s48
      %p55 = scmp.eq.s32.totalorder %s22, 1
      %p56 = por %p54, %p55
      %p57 = scmp.ne.s32.totalorder %s48, %s49
      %p58 = scmp.eq.s32.totalorder %s22, 0
      %p59 = por %p57, %p58
      %p60 = scmp.ne.s32.totalorder %s48, %s49
      %p61 = scmp.eq.s32.totalorder %s23, 1
      %p62 = por %p60, %p61
      %p64 = scmp.ne.s32.totalorder %s49, %s63
      %p65 = scmp.eq.s32.totalorder %s23, 0
      %p66 = por %p64, %p65
      %s67 = ssub.s32 %s17, %s24
      %p68 = scmp.eq.s32.totalorder %s67, 0
      %s70 = sadd.s32 %s69, 1
      %s71 = scalar_select %p68, %s69, %s70
      %p74 = pneg %p68
      %p75 = scmp.eq.s32.totalorder %s17, 1
      %p76 = por %p74, %p75
      %p77 = scmp.ne.s32.totalorder %s69, %s72
      %p78 = scmp.eq.s32.totalorder %s17, 0
      %p79 = por %p77, %p78
      %p80 = scmp.ne.s32.totalorder %s69, %s72
      %p81 = scmp.eq.s32.totalorder %s22, 1
      %p82 = por %p80, %p81
      %p83 = scmp.ne.s32.totalorder %s72, %s73
      %p84 = scmp.eq.s32.totalorder %s22, 0
      %p85 = por %p83, %p84
      %p86 = scmp.ne.s32.totalorder %s72, %s73
      %p87 = scmp.eq.s32.totalorder %s23, 1
      %p88 = por %p86, %p87
      %p90 = scmp.ne.s32.totalorder %s73, %s89
      %p91 = scmp.eq.s32.totalorder %s23, 0
      %p92 = por %p90, %p91
      %s93 = ssub.s32 %s17, %s24
      %p94 = scmp.eq.s32.totalorder %s93, 0
      %s96 = sadd.s32 %s95, 1
      %s97 = scalar_select %p94, %s95, %s96
      %p100 = pneg %p94
      %p101 = scmp.eq.s32.totalorder %s17, 1
      %p102 = por %p100, %p101
      %p103 = scmp.ne.s32.totalorder %s95, %s98
      %p104 = scmp.eq.s32.totalorder %s17, 0
      %p105 = por %p103, %p104
      %p106 = scmp.ne.s32.totalorder %s95, %s98
      %p107 = scmp.eq.s32.totalorder %s22, 1
      %p108 = por %p106, %p107
      %p109 = scmp.ne.s32.totalorder %s98, %s99
      %p110 = scmp.eq.s32.totalorder %s22, 0
      %p111 = por %p109, %p110
      %p112 = scmp.ne.s32.totalorder %s98, %s99
      %p113 = scmp.eq.s32.totalorder %s23, 1
      %p114 = por %p112, %p113
      %p116 = scmp.ne.s32.totalorder %s99, %s115
      %p117 = scmp.eq.s32.totalorder %s23, 0
      %p118 = por %p116, %p117
      %p119 = scmp.le.s32.totalorder 1, %s17
      %p120 = scmp.lt.s32.totalorder %s17, 3
      %p121 = pnand %p119, %p120
      %p122 = pneg %p121
      // Predicated region
      $region9: #{tpu_custom_call.1} parent=5 // pred_check
        _
      $region10: #{tpu_custom_call.1} parent=5 // pred_check_branch
        %124 = sbr.rel (%p121) target = $region12
      $region11: #{tpu_custom_call.1} parent=5 // pred_region
        %s125 = ssub.s32 %s17, 1
        // Predicated region
        $region13: #{tpu_custom_call.1} parent=11 // pred_check
          %p126 = pneg %p38
        $region14: #{tpu_custom_call.1} parent=11 // pred_check_branch
          %128 = sbr.rel (%p126) target = $region16
        $region15: #{tpu_custom_call.1} parent=11 // pred_region
          %s130 = ssub.s32 64, 64
          %131 = vsyncadd [#allocation5], %s130
          %134 = dma.hbm_to_smem %s0, 64, [#allocation2], [#allocation5]
        $region16: #{tpu_custom_call.1} parent=11 // pred_fallthru
          _
        // Predicated region
        $region17: #{tpu_custom_call.1} parent=11 // pred_check
          %p135 = pneg %p59
        $region18: #{tpu_custom_call.1} parent=11 // pred_check_branch
          %137 = sbr.rel (%p135) target = $region20
        $region19: #{tpu_custom_call.1} parent=11 // pred_region
          %s139 = ssub.s32 16, 16
          %140 = vsyncadd [#allocation6], %s139
          %s142 = sshll.u32 %s1, 4
          %s143 = int_to_ptr.vmem [resolvable:$true] %s142
          %145 = dma.vmem_to_smem %s143, 16, [#allocation7], [#allocation6]
        $region20: #{tpu_custom_call.1} parent=11 // pred_fallthru
          _
      $region12: #{tpu_custom_call.1} parent=5 // pred_fallthru
        _
      %p146 = scmp.lt.s32.totalorder %s17, 2
      // Predicated region
      $region21: #{tpu_custom_call.1} parent=5 // pred_check
        %p147 = pneg %p146
      $region22: #{tpu_custom_call.1} parent=5 // pred_check_branch
        %149 = sbr.rel (%p147) target = $region24
      $region23: #{tpu_custom_call.1} parent=5 // pred_region
        // Predicated region
        $region25: #{tpu_custom_call.1} parent=23 // pred_check
          %p150 = pneg %p79
        $region26: #{tpu_custom_call.1} parent=23 // pred_check_branch
          %152 = sbr.rel (%p150) target = $region28
        $region27: #{tpu_custom_call.1} parent=23 // pred_region
          %s153 = sand.u32 %s69, 1
          %s154 = scalar_lea.sflag [#allocation3], %s153
          %s155 = sand.u32 %s69, 1
          %s156 = smul.addr %s155, 8
          %s157 = scalar_lea.vmem [#allocation8], %s156
          %s159 = ssub.s32 128, 128
          %160 = vsyncadd %s154, %s159
          %s161 = smul.addr %s17, 4
          %s162 = smul.addr %s161, 32
          %s163 = scalar_lea.hbm %s2, %s162
          %s164 = sshll.u32 %s157, 4
          %s165 = int_to_ptr.vmem [resolvable:$true] %s164
          %170 = dma.hbm_to_vmem [thread:$0]  %s163, 128, %s165, %s154, 32, 32, 2
        $region28: #{tpu_custom_call.1} parent=23 // pred_fallthru
          _
      $region24: #{tpu_custom_call.1} parent=5 // pred_fallthru
        _
      %p171 = scmp.le.s32.totalorder 1, %s17
      %p172 = scmp.lt.s32.totalorder %s17, 3
      %p173 = pnand %p171, %p172
      %p174 = pneg %p173
      // Predicated region
      $region29: #{tpu_custom_call.1} parent=5 // pred_check
        _
      $region30: #{tpu_custom_call.1} parent=5 // pred_check_branch
        %176 = sbr.rel (%p173) target = $region32
      $region31: #{tpu_custom_call.1} parent=5 // pred_region
        %s177 = ssub.s32 %s17, 1
        // Predicated region
        $region33: #{tpu_custom_call.1} parent=31 // pred_check
          %p178 = pneg %p38
        $region34: #{tpu_custom_call.1} parent=31 // pred_check_branch
          %180 = sbr.rel (%p178) target = $region36
        $region35: #{tpu_custom_call.1} parent=31 // pred_region
          %181 = dma.done [#allocation5], 64
        $region36: #{tpu_custom_call.1} parent=31 // pred_fallthru
          _
        // Predicated region
        $region37: #{tpu_custom_call.1} parent=31 // pred_check
          %p182 = pneg %p59
        $region38: #{tpu_custom_call.1} parent=31 // pred_check_branch
          %184 = sbr.rel (%p182) target = $region40
        $region39: #{tpu_custom_call.1} parent=31 // pred_region
          %185 = dma.done [#allocation6], 16
        $region40: #{tpu_custom_call.1} parent=31 // pred_fallthru
          _
        %s186 = sand.u32 %s72, 1
        %s187 = scalar_lea.sflag [#allocation3], %s186
        %s188 = sand.u32 %s72, 1
        %s189 = smul.addr %s188, 8
        %s190 = scalar_lea.vmem [#allocation8], %s189
        // Predicated region
        $region41: #{tpu_custom_call.1} parent=31 // pred_check
          %p191 = pneg %p85
        $region42: #{tpu_custom_call.1} parent=31 // pred_check_branch
          %193 = sbr.rel (%p191) target = $region44
        $region43: #{tpu_custom_call.1} parent=31 // pred_region
          %194 = dma.done %s187, 128
        $region44: #{tpu_custom_call.1} parent=31 // pred_fallthru
          _
        %195 = sfence
        %p196 = pneg %p38
        %p197 = pneg %p35
        %p198 = pneg %p59
        %p199 = pneg %p56
        %s200 = sand.u32 %s72, 1
        %s201 = scalar_lea.sflag [#allocation3], %s200
        %s202 = sand.u32 %s72, 1
        %s203 = smul.addr %s202, 8
        %s204 = scalar_lea.vmem [#allocation8], %s203
        %p205 = pneg %p85
        %p206 = pneg %p82
        %p207 = pneg %p111
        %p208 = pneg %p108
        %s209 = sand.u32 %s98, 1
        %s210 = scalar_lea.sflag [#allocation4], %s209
        %s211 = sand.u32 %s98, 1
        %s212 = smul.addr %s211, 8
        %s213 = scalar_lea.vmem [#allocation9], %s212
        %v214 = vld [vmem:[%s190] sm:$0x3]
        %s215 = scalar_lea.vmem %s190, 2 [#allocation8]
        %v216 = vld [vmem:[%s215] sm:$0x3]
        %s217 = scalar_lea.vmem %s190, 4 [#allocation8]
        %v218 = vld [vmem:[%s217] sm:$0x3]
        %s219 = scalar_lea.vmem %s190, 6 [#allocation8]
        %v220 = vld [vmem:[%s219] sm:$0x3]
        %s221 = sld [smem:[#allocation2]]
        %v222 = vstv %s221
        %v223 = vmul.f32 %v214, %v222
        %s224 = sld [smem:[#allocation7]]
        %v225 = vstv %s224
        %v226 = vadd.f32 %v223, %v225
        %s227 = sld [smem:[#allocation2 + $0x1]]
        %v228 = vstv %s227
        %v229 = vmul.f32 %v216, %v228
        %v230 = vadd.f32 %v226, %v229
        %s231 = sld [smem:[#allocation2 + $0x2]]
        %v232 = vstv %s231
        %v233 = vmul.f32 %v218, %v232
        %v234 = vadd.f32 %v230, %v233
        %s235 = sld [smem:[#allocation2 + $0x3]]
        %v236 = vstv %s235
        %v237 = vmul.f32 %v220, %v236
        %v238 = vadd.f32 %v234, %v237
        %239 = vst [vmem:[%s213] sm:$0x3] %v238
        %s240 = sld [smem:[#allocation2 + $0x80]]
        %v241 = vstv %s240
        %v242 = vmul.f32 %v214, %v241
        %s243 = sld [smem:[#allocation7 + $0x1]]
        %v244 = vstv %s243
        %v245 = vadd.f32 %v242, %v244
        %s246 = sld [smem:[#allocation2 + $0x81]]
        %v247 = vstv %s246
        %v248 = vmul.f32 %v216, %v247
        %v249 = vadd.f32 %v245, %v248
        %s250 = sld [smem:[#allocation2 + $0x82]]
        %v251 = vstv %s250
        %v252 = vmul.f32 %v218, %v251
        %v253 = vadd.f32 %v249, %v252
        %s254 = sld [smem:[#allocation2 + $0x83]]
        %v255 = vstv %s254
        %v256 = vmul.f32 %v220, %v255
        %v257 = vadd.f32 %v253, %v256
        %s258 = scalar_lea.vmem %s213, 2 [#allocation9]
        %259 = vst [vmem:[%s258] sm:$0x3] %v257
        %s260 = sld [smem:[#allocation2 + $0x100]]
        %v261 = vstv %s260
        %v262 = vmul.f32 %v214, %v261
        %s263 = sld [smem:[#allocation7 + $0x2]]
        %v264 = vstv %s263
        %v265 = vadd.f32 %v262, %v264
        %s266 = sld [smem:[#allocation2 + $0x101]]
        %v267 = vstv %s266
        %v268 = vmul.f32 %v216, %v267
        %v269 = vadd.f32 %v265, %v268
        %s270 = sld [smem:[#allocation2 + $0x102]]
        %v271 = vstv %s270
        %v272 = vmul.f32 %v218, %v271
        %v273 = vadd.f32 %v269, %v272
        %s274 = sld [smem:[#allocation2 + $0x103]]
        %v275 = vstv %s274
        %v276 = vmul.f32 %v220, %v275
        %v277 = vadd.f32 %v273, %v276
        %s278 = scalar_lea.vmem %s213, 4 [#allocation9]
        %279 = vst [vmem:[%s278] sm:$0x3] %v277
        %s280 = sld [smem:[#allocation2 + $0x180]]
        %v281 = vstv %s280
        %v282 = vmul.f32 %v214, %v281
        %s283 = sld [smem:[#allocation7 + $0x3]]
        %v284 = vstv %s283
        %v285 = vadd.f32 %v282, %v284
        %s286 = sld [smem:[#allocation2 + $0x181]]
        %v287 = vstv %s286
        %v288 = vmul.f32 %v216, %v287
        %v289 = vadd.f32 %v285, %v288
        %s290 = sld [smem:[#allocation2 + $0x182]]
        %v291 = vstv %s290
        %v292 = vmul.f32 %v218, %v291
        %v293 = vadd.f32 %v289, %v292
        %s294 = sld [smem:[#allocation2 + $0x183]]
        %v295 = vstv %s294
        %v296 = vmul.f32 %v220, %v295
        %v297 = vadd.f32 %v293, %v296
        %s298 = scalar_lea.vmem %s213, 6 [#allocation9]
        %299 = vst [vmem:[%s298] sm:$0x3] %v297
        %s300 = sand.u32 %s98, 1
        %s301 = scalar_lea.sflag [#allocation4], %s300
        %s302 = sand.u32 %s98, 1
        %s303 = smul.addr %s302, 8
        %s304 = scalar_lea.vmem [#allocation9], %s303
        // Predicated region
        $region45: #{tpu_custom_call.1} parent=31 // pred_check
          %p305 = pneg %p108
        $region46: #{tpu_custom_call.1} parent=31 // pred_check_branch
          %307 = sbr.rel (%p305) target = $region48
        $region47: #{tpu_custom_call.1} parent=31 // pred_region
          %s309 = ssub.s32 128, 128
          %310 = vsyncadd %s301, %s309
          %s311 = smul.addr %s22, 4
          %s312 = smul.addr %s311, 32
          %s313 = scalar_lea.hbm %s3, %s312
          %s314 = sshll.u32 %s304, 4
          %s315 = int_to_ptr.vmem [resolvable:$true] %s314
          %320 = dma.vmem_to_hbm [thread:$0]  %s315, 128, %s313, %s301, 32, 32, 2
        $region48: #{tpu_custom_call.1} parent=31 // pred_fallthru
          _
      $region32: #{tpu_custom_call.1} parent=5 // pred_fallthru
        _
      %p321 = scmp.le.s32.totalorder 2, %s17
      // Predicated region
      $region49: #{tpu_custom_call.1} parent=5 // pred_check
        %p322 = pneg %p321
      $region50: #{tpu_custom_call.1} parent=5 // pred_check_branch
        %324 = sbr.rel (%p322) target = $region52
      $region51: #{tpu_custom_call.1} parent=5 // pred_region
        %s325 = ssub.s32 %s17, 2
        // Predicated region
        $region53: #{tpu_custom_call.1} parent=51 // pred_check
          %p326 = pneg %p114
        $region54: #{tpu_custom_call.1} parent=51 // pred_check_branch
          %328 = sbr.rel (%p326) target = $region56
        $region55: #{tpu_custom_call.1} parent=51 // pred_region
          %s329 = sand.u32 %s99, 1
          %s330 = scalar_lea.sflag [#allocation4], %s329
          %s331 = sand.u32 %s99, 1
          %s332 = smul.addr %s331, 8
          %s333 = scalar_lea.vmem [#allocation9], %s332
          %334 = dma.done %s330, 128
        $region56: #{tpu_custom_call.1} parent=51 // pred_fallthru
          _
      $region52: #{tpu_custom_call.1} parent=5 // pred_fallthru
        _
    $region6: #{tpu_custom_call.1} parent=1 // loop_footer
      %s21 = sadd.s32 1, %s17
    $region7: #{tpu_custom_call.1} parent=1 // loop_footer_branch
      %16 = sbr.rel target = $region3
    $region8: #{tpu_custom_call.1} parent=1 // loop_exit
      _
    %335 = vsyncpa [#allocation3], 1
    %s336 = scalar_lea.sflag [#allocation3], 1
    %337 = vsyncpa %s336, 1
    %338 = vsyncpa [#allocation4], 1
    %s339 = scalar_lea.sflag [#allocation4], 1
    %340 = vsyncpa %s339, 1
    %341 = vsyncpa [#allocation5], 1
    %s342 = scalar_lea.sflag [#allocation5], 1
    %343 = vsyncpa %s342, 1
    %344 = vsyncpa [#allocation6], 1
    %s345 = scalar_lea.sflag [#allocation6], 1
    %346 = vsyncpa %s345, 1

</llo_original>
